<compile_context>
chip_gen: v5e
topology: v5e:2x2
jax: 0.10.0
libtpu: 0.0.40
codegen_flags: <defaults>
</compile_context>

<pallas_src>
import functools
import math

import jax
import jax.numpy as jnp
import numpy as np
from jax.experimental import pallas as pl
from jax.experimental.pallas import tpu as pltpu  # noqa: F401  (TPU backend)

# ---------------- configuration (small, consistent with the module) ----------
N_HEAD = 4
N_FEAT = 32
D_K = N_FEAT // N_HEAD
BATCH = 2
TIME1 = 8
TIME2 = 8

LANE = 128            # packed working width: exactly one f32 lane tile
OUT_COL = 0           # attention output occupies cols [0, F)
K_COL = N_FEAT        # K (and packed Q) occupy cols [F, 2F)
V_COL = 2 * N_FEAT    # V occupies cols [2F, 3F)

# bf16 MXU operands with f32 accumulation (native on v5e/v6e/v7x).
# Set to jnp.float32 for a bit-tighter numerical check (~1e-6 vs f32 reference).
MXU_DTYPE = jnp.bfloat16


# ---------------- small matmul helpers (f32 accumulation on the MXU) ---------
def _mm(a, b):
    """a @ b with operands cast to MXU_DTYPE, f32 accumulation."""
    return jnp.dot(a.astype(MXU_DTYPE), b.astype(MXU_DTYPE),
                   preferred_element_type=jnp.float32)


def _mm_nt(a, b):
    """a @ b.T (contract last dims of both) without an explicit transpose."""
    return jax.lax.dot_general(
        a.astype(MXU_DTYPE), b.astype(MXU_DTYPE),
        dimension_numbers=(((1,), (1,)), ((), ())),
        preferred_element_type=jnp.float32)


# ---------------- kernel -------------------------------------------------------
def _mha_kernel(q_ref, k_ref, v_ref, w_ref, b_ref, hmask_ref, madd_ref,
                out_ref, *, f, bt1, bt2, n_head):
    """Whole MHA forward in one invocation (no grid).

    q_ref: (B*T1, F)   k_ref/v_ref: (B*T2, F)
    w_ref: (3F + 128, 128) packed [Wq*scale | Wk | Wv | Wo] slab (MXU dtype)
    b_ref: (3, 128) packed biases  [bq*scale | bk,bv | bo]   (f32)
    hmask_ref: (H*B*T1, 128) 0/1 head block-diagonal mask    (f32)
    madd_ref:  (H*B*T1, B*T2) additive mask, 0 keep / -1e30 masked (f32)
    out_ref:   (B*T1 + B*T2, 128) merged lane-dense output
               rows [0,B*T1): out in cols [0,F); rows [B*T1,..): k|v in [F,3F).
    """
    # Free sublane views into the packed weight slab (offsets are multiples of 8).
    wq = w_ref[0 * f:1 * f, :]            # Wq^T * 1/sqrt(d_k), lands in K_COL cols
    wk = w_ref[1 * f:2 * f, :]            # Wk^T,               lands in K_COL cols
    wv = w_ref[2 * f:3 * f, :]            # Wv^T,               lands in V_COL cols
    wo = w_ref[3 * f:3 * f + LANE, :]     # Wo^T, reads V_COL cols -> OUT_COL cols
    bq = b_ref[0:1, :]
    bkv = b_ref[1:2, :]
    bo = b_ref[2:3, :]

    # Projections: lane-aligned 128-wide results, no in-kernel lane slicing.
    q128 = _mm(q_ref[...], wq) + bq                          # (bt1, 128)
    kv128 = _mm(k_ref[...], wk) + _mm(v_ref[...], wv) + bkv  # (bt2, 128)

    hmask = hmask_ref[...]                                   # (H*bt1, 128)
    madd = madd_ref[...]                                     # (H*bt1, bt2)

    # Head-major, block-diagonal packed queries: row block h keeps only head h.
    q_pack = jnp.concatenate([q128] * n_head, axis=0) * hmask  # (H*bt1, 128)

    # All heads' QK^T in ONE matmul (scale already folded into wq/bq).
    s = _mm_nt(q_pack, kv128) + madd                         # (H*bt1, bt2) f32

    # Row-wise softmax (per head, per query, cross-batch killed by madd), f32.
    m = jnp.max(s, axis=-1, keepdims=True)
    e = jnp.exp(s - m)
    denom = jnp.sum(e, axis=-1, keepdims=True)
    attn = e * pl.reciprocal(denom, approx=True)
    attn = attn * (madd >= 0.0).astype(jnp.float32)          # masked_fill(0.0)

    # All heads' attn @ V in ONE matmul; hmask keeps each ctx_h in its own cols.
    c = _mm(attn, kv128) * hmask                             # (H*bt1, 128)

    # Head merge = sum over row blocks (free, 8-aligned sublane slices).
    ctx = c[0:bt1, :]
    for h in range(1, n_head):
        ctx = ctx + c[h * bt1:(h + 1) * bt1, :]              # (bt1, 128)

    # Output projection reads the V_COL columns (others hit zero weight rows).
    out128 = _mm(ctx, wo) + bo                               # (bt1, 128)

    # Single lane-dense (128-wide) merged output, two 8-aligned row-range stores.
    out_ref[0:bt1, :] = out128.astype(out_ref.dtype)
    out_ref[bt1:bt1 + bt2, :] = kv128.astype(out_ref.dtype)


# ---------------- wrapper ------------------------------------------------------
def _build_additive_mask(mask, b, t1, t2):
    """(B*T1, B*T2) additive mask: 0 keep / -1e30 masked.

    Encodes the user mask (1 keep, 0 masked; broadcast over time1 if (B,1,T2))
    AND the block-diagonal batch structure needed because the batch is folded
    into the matmul M/N dimensions.
    """
    if mask is None:
        keep = jnp.ones((b, t1, t2), jnp.float32)
    else:
        keep = jnp.broadcast_to(mask.astype(jnp.float32), (b, t1, t2))
    eye = jnp.eye(b, dtype=jnp.float32)
    keep_full = jnp.einsum('bc,bts->btcs', eye, keep).reshape(b * t1, b * t2)
    return (keep_full - 1.0) * 1e30


def multi_headed_attention(query, key, value, mask, params):
    """query: (B,T1,F)  key/value: (B,T2,F)  mask: (B,Tm,T2), Tm in {1,T1}.

    Returns (out (B,T1,F), new_cache (B,H,T2,2*d_k)) matching the PyTorch
    module's empty-cache forward. Works for self- and cross-attention alike.
    """
    b, t1, f = query.shape
    t2 = key.shape[1]
    assert f == N_FEAT
    bt1, bt2 = b * t1, b * t2
    scale = 1.0 / math.sqrt(D_K)

    # ---- packed weight slab (3F + 128, 128): one lane-dense DMA --------------
    w_all = jnp.zeros((3 * f + LANE, LANE), jnp.float32)
    w_all = w_all.at[0:f, K_COL:K_COL + f].set(params['wq'].T * scale)
    w_all = w_all.at[f:2 * f, K_COL:K_COL + f].set(params['wk'].T)
    w_all = w_all.at[2 * f:3 * f, V_COL:V_COL + f].set(params['wv'].T)
    w_all = w_all.at[3 * f + V_COL:3 * f + V_COL + f,
                     OUT_COL:OUT_COL + f].set(params['wo'].T)
    w_all = w_all.astype(MXU_DTYPE)

    # ---- packed biases (3, 128), kept in f32 ----------------------------------
    b_all = jnp.zeros((3, LANE), jnp.float32)
    b_all = b_all.at[0, K_COL:K_COL + f].set(params['bq'] * scale)
    b_all = b_all.at[1, K_COL:K_COL + f].set(params['bk'])
    b_all = b_all.at[1, V_COL:V_COL + f].set(params['bv'])
    b_all = b_all.at[2, OUT_COL:OUT_COL + f].set(params['bo'])

    # ---- static head block-diagonal 0/1 mask (H*B*T1, 128) --------------------
    hm = np.zeros((N_HEAD * bt1, LANE), np.float32)
    for h in range(N_HEAD):
        hm[h * bt1:(h + 1) * bt1, K_COL + h * D_K:K_COL + (h + 1) * D_K] = 1.0
        hm[h * bt1:(h + 1) * bt1, V_COL + h * D_K:V_COL + (h + 1) * D_K] = 1.0
    hmask = jnp.asarray(hm)

    # ---- additive mask tiled over heads (H*B*T1, B*T2) ------------------------
    madd = jnp.tile(_build_additive_mask(mask, b, t1, t2), (N_HEAD, 1))

    qf = query.reshape(bt1, f)
    kf = key.reshape(bt2, f)
    vf = value.reshape(bt2, f)

    kernel = functools.partial(_mha_kernel, f=f, bt1=bt1, bt2=bt2, n_head=N_HEAD)

    # Single gridless invocation: whole problem fits easily in VMEM, and any
    # grid would only add per-step overhead at these shapes.
    merged = pl.pallas_call(
        kernel,
        out_shape=jax.ShapeDtypeStruct((bt1 + bt2, LANE), query.dtype),
    )(qf, kf, vf, w_all, b_all, hmask, madd)

    out = merged[:bt1, OUT_COL:OUT_COL + f].reshape(b, t1, f)

    # Cache layout plumbing (reshape/transpose/concat) stays in XLA:
    # new_cache = cat(k_heads, v_heads, dim=-1), shape (B, H, T2, 2*d_k).
    k_flat = merged[bt1:, K_COL:K_COL + f]
    v_flat = merged[bt1:, V_COL:V_COL + f]
    kh = k_flat.reshape(b, t2, N_HEAD, D_K).transpose(0, 2, 1, 3)
    vh = v_flat.reshape(b, t2, N_HEAD, D_K).transpose(0, 2, 1, 3)
    new_cache = jnp.concatenate([kh, vh], axis=-1)
    return out, new_cache


# ---------------- pure-JAX reference (mirrors the PyTorch module, f32) --------
def _reference(query, key, value, mask, params):
    b, t1, f = query.shape
    t2 = key.shape[1]
    q = query @ params['wq'].T + params['bq']
    k = key @ params['wk'].T + params['bk']
    v = value @ params['wv'].T + params['bv']
    q = q.reshape(b, t1, N_HEAD, D_K).transpose(0, 2, 1, 3)
    k = k.reshape(b, t2, N_HEAD, D_K).transpose(0, 2, 1, 3)
    v = v.reshape(b, t2, N_HEAD, D_K).transpose(0, 2, 1, 3)
    new_cache = jnp.concatenate([k, v], axis=-1)
    scores = jnp.einsum('bhtd,bhsd->bhts', q, k) / math.sqrt(D_K)
    neg_mask = (mask == 0)[:, None, :, :]
    scores = jnp.where(neg_mask, -jnp.inf, scores)
    attn = jax.nn.softmax(scores, axis=-1)
    attn = jnp.where(neg_mask, 0.0, attn)
    x = jnp.einsum('bhts,bhsd->bhtd', attn, v)
    x = x.transpose(0, 2, 1, 3).reshape(b, t1, f)
    out = x @ params['wo'].T + params['bo']
    return out, new_cache


if __name__ == "__main__":
    key0 = jax.random.PRNGKey(0)
    keys = jax.random.split(key0, 12)

    # deterministic "PyTorch-style" parameter init: U(-1/sqrt(fan_in), ...)
    bound = 1.0 / math.sqrt(N_FEAT)
    u = lambda kk, shape: jax.random.uniform(kk, shape, jnp.float32, -bound, bound)
    params = {
        'wq': u(keys[0], (N_FEAT, N_FEAT)), 'bq': u(keys[1], (N_FEAT,)),
        'wk': u(keys[2], (N_FEAT, N_FEAT)), 'bk': u(keys[3], (N_FEAT,)),
        'wv': u(keys[4], (N_FEAT, N_FEAT)), 'bv': u(keys[5], (N_FEAT,)),
        'wo': u(keys[6], (N_FEAT, N_FEAT)), 'bo': u(keys[7], (N_FEAT,)),
    }

    # bf16 MXU operands vs. pure-f32 reference -> loose-ish tolerance.
    TOL = 2e-2

    # ---- test 1: cross-attention with a padding mask (B, 1, T2) --------------
    query = jax.random.normal(keys[8], (BATCH, TIME1, N_FEAT), jnp.float32)
    key_t = jax.random.normal(keys[9], (BATCH, TIME2, N_FEAT), jnp.float32)
    value = jax.random.normal(keys[10], (BATCH, TIME2, N_FEAT), jnp.float32)

    mask = np.ones((BATCH, 1, TIME2), dtype=np.int32)
    mask[1, 0, -2:] = 0                     # last 2 keys of batch 1 are padding
    mask = jnp.asarray(mask)

    out, new_cache = multi_headed_attention(query, key_t, value, mask, params)
    jax.block_until_ready((out, new_cache))

    ref_out, ref_cache = _reference(query, key_t, value, mask, params)
    np.testing.assert_allclose(np.asarray(out), np.asarray(ref_out),
                               rtol=TOL, atol=TOL)
    np.testing.assert_allclose(np.asarray(new_cache), np.asarray(ref_cache),
                               rtol=TOL, atol=TOL)

    # ---- test 2: self-attention with a (B, T, T) causal mask ------------------
    x = jax.random.normal(keys[11], (BATCH, TIME1, N_FEAT), jnp.float32)
    causal = jnp.asarray(np.tril(np.ones((TIME1, TIME1), dtype=np.int32)))
    mask2 = jnp.broadcast_to(causal[None], (BATCH, TIME1, TIME1))

    out2, cache2 = multi_headed_attention(x, x, x, mask2, params)
    jax.block_until_ready((out2, cache2))

    ref_out2, ref_cache2 = _reference(x, x, x, mask2, params)
    np.testing.assert_allclose(np.asarray(out2), np.asarray(ref_out2),
                               rtol=TOL, atol=TOL)
    np.testing.assert_allclose(np.asarray(cache2), np.asarray(ref_cache2),
                               rtol=TOL, atol=TOL)

    print("KERNEL_OK")
</pallas_src>

<mosaic_0001>
module attributes {stable_mosaic.version = 11 : i64} {
  func.func @_mha_kernel(%arg0: memref<16x32xf32, #tpu.memory_space<vmem>>, %arg1: memref<16x32xf32, #tpu.memory_space<vmem>>, %arg2: memref<16x32xf32, #tpu.memory_space<vmem>>, %arg3: memref<224x128xbf16, #tpu.memory_space<vmem>>, %arg4: memref<3x128xf32, #tpu.memory_space<vmem>>, %arg5: memref<64x128xf32, #tpu.memory_space<vmem>>, %arg6: memref<64x16xf32, #tpu.memory_space<vmem>>, %arg7: memref<32x128xf32, #tpu.memory_space<vmem>>) attributes {dimension_semantics = [], scalar_prefetch = 0 : i64, scratch_operands = 0 : i64, tpu.core_type = #tpu.core_type<tc>} {
    %c0 = arith.constant 0 : index
    %c0_0 = arith.constant 0 : index
    %0 = vector.load %arg3[%c0, %c0_0] : memref<224x128xbf16, #tpu.memory_space<vmem>>, vector<32x128xbf16>
    %c32 = arith.constant 32 : index
    %c0_1 = arith.constant 0 : index
    %1 = vector.load %arg3[%c32, %c0_1] : memref<224x128xbf16, #tpu.memory_space<vmem>>, vector<32x128xbf16>
    %c64 = arith.constant 64 : index
    %c0_2 = arith.constant 0 : index
    %2 = vector.load %arg3[%c64, %c0_2] : memref<224x128xbf16, #tpu.memory_space<vmem>>, vector<32x128xbf16>
    %c96 = arith.constant 96 : index
    %c0_3 = arith.constant 0 : index
    %3 = vector.load %arg3[%c96, %c0_3] : memref<224x128xbf16, #tpu.memory_space<vmem>>, vector<128x128xbf16>
    %c0_4 = arith.constant 0 : index
    %c0_5 = arith.constant 0 : index
    %4 = vector.load %arg4[%c0_4, %c0_5] : memref<3x128xf32, #tpu.memory_space<vmem>>, vector<1x128xf32>
    %c1 = arith.constant 1 : index
    %c0_6 = arith.constant 0 : index
    %5 = vector.load %arg4[%c1, %c0_6] : memref<3x128xf32, #tpu.memory_space<vmem>>, vector<1x128xf32>
    %c2 = arith.constant 2 : index
    %c0_7 = arith.constant 0 : index
    %6 = vector.load %arg4[%c2, %c0_7] : memref<3x128xf32, #tpu.memory_space<vmem>>, vector<1x128xf32>
    %c0_8 = arith.constant 0 : index
    %c0_9 = arith.constant 0 : index
    %7 = vector.load %arg0[%c0_8, %c0_9] : memref<16x32xf32, #tpu.memory_space<vmem>>, vector<16x32xf32>
    %8 = arith.truncf %7 : vector<16x32xf32> to vector<16x32xbf16>
    %cst = arith.constant dense<0.000000e+00> : vector<16x128xf32>
    %9 = tpu.matmul %8, %0, %cst {dimension_numbers = #tpu.dot_dimension_numbers<[1], [0], [0], [1], [0, 0, 1, 1], [], []>} : vector<16x32xbf16>, vector<32x128xbf16>, vector<16x128xf32> -> vector<16x128xf32>
    %10 = vector.broadcast %4 : vector<1x128xf32> to vector<16x128xf32>
    %11 = arith.addf %9, %10 : vector<16x128xf32>
    %c0_10 = arith.constant 0 : index
    %c0_11 = arith.constant 0 : index
    %12 = vector.load %arg1[%c0_10, %c0_11] : memref<16x32xf32, #tpu.memory_space<vmem>>, vector<16x32xf32>
    %13 = arith.truncf %12 : vector<16x32xf32> to vector<16x32xbf16>
    %cst_12 = arith.constant dense<0.000000e+00> : vector<16x128xf32>
    %14 = tpu.matmul %13, %1, %cst_12 {dimension_numbers = #tpu.dot_dimension_numbers<[1], [0], [0], [1], [0, 0, 1, 1], [], []>} : vector<16x32xbf16>, vector<32x128xbf16>, vector<16x128xf32> -> vector<16x128xf32>
    %c0_13 = arith.constant 0 : index
    %c0_14 = arith.constant 0 : index
    %15 = vector.load %arg2[%c0_13, %c0_14] : memref<16x32xf32, #tpu.memory_space<vmem>>, vector<16x32xf32>
    %16 = arith.truncf %15 : vector<16x32xf32> to vector<16x32xbf16>
    %cst_15 = arith.constant dense<0.000000e+00> : vector<16x128xf32>
    %17 = tpu.matmul %16, %2, %cst_15 {dimension_numbers = #tpu.dot_dimension_numbers<[1], [0], [0], [1], [0, 0, 1, 1], [], []>} : vector<16x32xbf16>, vector<32x128xbf16>, vector<16x128xf32> -> vector<16x128xf32>
    %18 = arith.addf %14, %17 : vector<16x128xf32>
    %19 = vector.broadcast %5 : vector<1x128xf32> to vector<16x128xf32>
    %20 = arith.addf %18, %19 : vector<16x128xf32>
    %c0_16 = arith.constant 0 : index
    %c0_17 = arith.constant 0 : index
    %21 = vector.load %arg5[%c0_16, %c0_17] : memref<64x128xf32, #tpu.memory_space<vmem>>, vector<64x128xf32>
    %c0_18 = arith.constant 0 : index
    %c0_19 = arith.constant 0 : index
    %22 = vector.load %arg6[%c0_18, %c0_19] : memref<64x16xf32, #tpu.memory_space<vmem>>, vector<64x16xf32>
    %23 = tpu.concatenate %11, %11, %11, %11 in 0 : vector<16x128xf32>, vector<16x128xf32>, vector<16x128xf32>, vector<16x128xf32> -> vector<64x128xf32>
    %24 = arith.mulf %23, %21 : vector<64x128xf32>
    %25 = arith.truncf %24 : vector<64x128xf32> to vector<64x128xbf16>
    %26 = arith.truncf %20 : vector<16x128xf32> to vector<16x128xbf16>
    %cst_20 = arith.constant dense<0.000000e+00> : vector<64x16xf32>
    %27 = tpu.matmul %25, %26, %cst_20 {dimension_numbers = #tpu.dot_dimension_numbers<[1], [1], [0], [0], [0, 0, 1, 0], [], []>} : vector<64x128xbf16>, vector<16x128xbf16>, vector<64x16xf32> -> vector<64x16xf32>
    %28 = arith.addf %27, %22 : vector<64x16xf32>
    %cst_21 = arith.constant dense<0xFF800000> : vector<64xf32>
    %29 = vector.multi_reduction <maximumf>, %28, %cst_21 [1] : vector<64x16xf32> to vector<64xf32>
    %30 = vector.shape_cast %29 : vector<64xf32> to vector<64x1xf32>
    %31 = vector.broadcast %30 : vector<64x1xf32> to vector<64x16xf32>
    %32 = arith.subf %28, %31 : vector<64x16xf32>
    %33 = math.exp %32 : vector<64x16xf32>
    %cst_22 = arith.constant dense<0.000000e+00> : vector<64xf32>
    %34 = vector.multi_reduction <add>, %33, %cst_22 [1] : vector<64x16xf32> to vector<64xf32>
    %35 = vector.shape_cast %34 : vector<64xf32> to vector<64x1xf32>
    %36 = tpu.reciprocal %35 {approx = true} : vector<64x1xf32> -> vector<64x1xf32>
    %37 = vector.broadcast %36 : vector<64x1xf32> to vector<64x16xf32>
    %38 = arith.mulf %33, %37 : vector<64x16xf32>
    %cst_23 = arith.constant 0.000000e+00 : f32
    %39 = vector.broadcast %cst_23 : f32 to vector<64x16xf32>
    %40 = arith.cmpf oge, %22, %39 : vector<64x16xf32>
    %41 = arith.extui %40 : vector<64x16xi1> to vector<64x16xi32>
    %42 = arith.sitofp %41 : vector<64x16xi32> to vector<64x16xf32>
    %43 = arith.mulf %38, %42 : vector<64x16xf32>
    %44 = arith.truncf %43 : vector<64x16xf32> to vector<64x16xbf16>
    %45 = arith.truncf %20 : vector<16x128xf32> to vector<16x128xbf16>
    %cst_24 = arith.constant dense<0.000000e+00> : vector<64x128xf32>
    %46 = tpu.matmul %44, %45, %cst_24 {dimension_numbers = #tpu.dot_dimension_numbers<[1], [0], [0], [1], [0, 0, 1, 1], [], []>} : vector<64x16xbf16>, vector<16x128xbf16>, vector<64x128xf32> -> vector<64x128xf32>
    %47 = arith.mulf %46, %21 : vector<64x128xf32>
    %48 = vector.extract_strided_slice %47 {offsets = [0, 0], sizes = [16, 128], strides = [1, 1]} : vector<64x128xf32> to vector<16x128xf32>
    %49 = vector.extract_strided_slice %47 {offsets = [16, 0], sizes = [16, 128], strides = [1, 1]} : vector<64x128xf32> to vector<16x128xf32>
    %50 = arith.addf %48, %49 : vector<16x128xf32>
    %51 = vector.extract_strided_slice %47 {offsets = [32, 0], sizes = [16, 128], strides = [1, 1]} : vector<64x128xf32> to vector<16x128xf32>
    %52 = arith.addf %50, %51 : vector<16x128xf32>
    %53 = vector.extract_strided_slice %47 {offsets = [48, 0], sizes = [16, 128], strides = [1, 1]} : vector<64x128xf32> to vector<16x128xf32>
    %54 = arith.addf %52, %53 : vector<16x128xf32>
    %55 = arith.truncf %54 : vector<16x128xf32> to vector<16x128xbf16>
    %cst_25 = arith.constant dense<0.000000e+00> : vector<16x128xf32>
    %56 = tpu.matmul %55, %3, %cst_25 {dimension_numbers = #tpu.dot_dimension_numbers<[1], [0], [0], [1], [0, 0, 1, 1], [], []>} : vector<16x128xbf16>, vector<128x128xbf16>, vector<16x128xf32> -> vector<16x128xf32>
    %57 = vector.broadcast %6 : vector<1x128xf32> to vector<16x128xf32>
    %58 = arith.addf %56, %57 : vector<16x128xf32>
    %c0_26 = arith.constant 0 : index
    %c0_27 = arith.constant 0 : index
    %59 = vector.load %arg7[%c0_26, %c0_27] : memref<32x128xf32, #tpu.memory_space<vmem>>, vector<16x128xf32>
    tpu.vector_store %arg7[%c0_26, %c0_27], %58 {strides = array<i32>} : memref<32x128xf32, #tpu.memory_space<vmem>>, vector<16x128xf32>,
    %c16 = arith.constant 16 : index
    %c0_28 = arith.constant 0 : index
    %60 = vector.load %arg7[%c16, %c0_28] : memref<32x128xf32, #tpu.memory_space<vmem>>, vector<16x128xf32>
    tpu.vector_store %arg7[%c16, %c0_28], %20 {strides = array<i32>} : memref<32x128xf32, #tpu.memory_space<vmem>>, vector<16x128xf32>,
    return
  }
}

</mosaic_0001>

<llo_original>
// kernel: tpu_custom_call.1
$region0: #{tpu_custom_call.1}
  #allocation0 [shape = 'u32[]', space=smem, size = 0x4, offset = 0x4, fixed_abs, tag = 'smem constant byte address 0x4 - core index']
  #allocation1 [shape = 'u32[72,128]{1,0:T(1,128)}', space=vmem, size = 0x9000, scoped, tag = 'internal scratch']
  %s0 = inlined_call_operand.vmem [shape: f32[16,32], index: 0, kind: input, shape index: {}]
  %s1 = inlined_call_operand.hbm [shape: f32[16,32], index: 1, kind: input, shape index: {}]
  %s2 = inlined_call_operand.hbm [shape: f32[16,32], index: 2, kind: input, shape index: {}]
  %s3 = inlined_call_operand.hbm [shape: bf16[224,128], index: 3, kind: input, shape index: {}]
  %s4 = inlined_call_operand.vmem [shape: f32[3,128], index: 4, kind: input, shape index: {}]
  %s5 = inlined_call_operand.vmem [shape: f32[64,128], index: 5, kind: input, shape index: {}]
  %s6 = inlined_call_operand.vmem [shape: f32[64,16], index: 6, kind: input, shape index: {}]
  %s7 = inlined_call_operand.hbm [shape: f32[32,128], index: 7, kind: output, shape index: {}]
  %s8 = sld [smem:[#allocation0]]
  $region50: #{tpu_custom_call.1} parent=0
    _
  %s10 = ssub.s32 1, %s8
  %s11 = scalar_select 0, %s10, %s8
  $region1: #{tpu_custom_call.1} parent=0
    #allocation2 [shape = 'u8[8192]{0}', space=vmem, size = 0x2000, scoped, tag = 'input window, operand 1, single buffered']
    #allocation3 [shape = 's32[1]{0}', space=sflag, size = 0x4, scoped, tag = 'scoped memory for tpu_custom_call.1']
    #allocation4 [shape = 's32[1]{0}', space=sflag, size = 0x4, scoped, tag = 'scoped memory for tpu_custom_call.1']
    #allocation5 [shape = 'u8[8192]{0}', space=vmem, size = 0x2000, scoped, tag = 'input window, operand 2, single buffered']
    #allocation6 [shape = 's32[1]{0}', space=sflag, size = 0x4, scoped, tag = 'scoped memory for tpu_custom_call.1']
    #allocation7 [shape = 'u8[57344]{0}', space=vmem, size = 0xe000, scoped, tag = 'input window, operand 3, single buffered']
    #allocation8 [shape = 'u8[16384]{0}', space=vmem, size = 0x4000, scoped, tag = 'output window, operand 0, single buffered']
    %12 = vsyncpa [#allocation3], 0
    %13 = vsyncpa [#allocation6], 0
    %14 = vsyncpa [#allocation4], 0
    // Predicated region
    $region2: #{tpu_custom_call.1} parent=1 // pred_check
      _
    $region3: #{tpu_custom_call.1} parent=1 // pred_check_branch
      %16 = sbr.rel (0) target = $region5
    $region4: #{tpu_custom_call.1} parent=1 // pred_region
      _
    $region5: #{tpu_custom_call.1} parent=1 // pred_fallthru
      _
    // Predicated region
    $region6: #{tpu_custom_call.1} parent=1 // pred_check
      _
    $region7: #{tpu_custom_call.1} parent=1 // pred_check_branch
      %18 = sbr.rel (0) target = $region9
    $region8: #{tpu_custom_call.1} parent=1 // pred_region
      %20 = vsyncadd [#allocation3], 0
      %s21 = sshll.u32 %s1, 4
      %s22 = int_to_ptr.hbm [resolvable:$true] %s21
      %s23 = sshll.u32 [#allocation2], 4
      %s24 = int_to_ptr.vmem [resolvable:$true] %s23
      %29 = dma.hbm_to_vmem [thread:$0]  %s22, 256, %s24, [#allocation3], 128, 128, 8
    $region9: #{tpu_custom_call.1} parent=1 // pred_fallthru
      _
    // Predicated region
    $region10: #{tpu_custom_call.1} parent=1 // pred_check
      _
    $region11: #{tpu_custom_call.1} parent=1 // pred_check_branch
      %31 = sbr.rel (0) target = $region13
    $region12: #{tpu_custom_call.1} parent=1 // pred_region
      %33 = vsyncadd [#allocation6], 0
      %s34 = sshll.u32 %s2, 4
      %s35 = int_to_ptr.hbm [resolvable:$true] %s34
      %s36 = sshll.u32 [#allocation5], 4
      %s37 = int_to_ptr.vmem [resolvable:$true] %s36
      %42 = dma.hbm_to_vmem [thread:$0]  %s35, 256, %s37, [#allocation6], 128, 128, 8
    $region13: #{tpu_custom_call.1} parent=1 // pred_fallthru
      _
    // Predicated region
    $region14: #{tpu_custom_call.1} parent=1 // pred_check
      _
    $region15: #{tpu_custom_call.1} parent=1 // pred_check_branch
      %44 = sbr.rel (0) target = $region17
    $region16: #{tpu_custom_call.1} parent=1 // pred_region
      %46 = vsyncadd [#allocation6], 0
      %s47 = sshll.u32 %s3, 4
      %s48 = int_to_ptr.hbm [resolvable:$true] %s47
      %s49 = sshll.u32 [#allocation7], 4
      %s50 = int_to_ptr.vmem [resolvable:$true] %s49
      %55 = dma.hbm_to_vmem [thread:$0]  %s48, 1792, %s50, [#allocation6], 64, 64, 4
    $region17: #{tpu_custom_call.1} parent=1 // pred_fallthru
      _
    // Predicated region
    $region18: #{tpu_custom_call.1} parent=1 // pred_check
      _
    $region19: #{tpu_custom_call.1} parent=1 // pred_check_branch
      %57 = sbr.rel (0) target = $region21
    $region20: #{tpu_custom_call.1} parent=1 // pred_region
      _
    $region21: #{tpu_custom_call.1} parent=1 // pred_fallthru
      _
    // Predicated region
    $region22: #{tpu_custom_call.1} parent=1 // pred_check
      _
    $region23: #{tpu_custom_call.1} parent=1 // pred_check_branch
      %59 = sbr.rel (0) target = $region25
    $region24: #{tpu_custom_call.1} parent=1 // pred_region
      _
    $region25: #{tpu_custom_call.1} parent=1 // pred_fallthru
      _
    // Predicated region
    $region26: #{tpu_custom_call.1} parent=1 // pred_check
      _
    $region27: #{tpu_custom_call.1} parent=1 // pred_check_branch
      %61 = sbr.rel (0) target = $region29
    $region28: #{tpu_custom_call.1} parent=1 // pred_region
      _
    $region29: #{tpu_custom_call.1} parent=1 // pred_fallthru
      _
    // Predicated region
    $region30: #{tpu_custom_call.1} parent=1 // pred_check
      _
    $region31: #{tpu_custom_call.1} parent=1 // pred_check_branch
      %63 = sbr.rel (0) target = $region33
    $region32: #{tpu_custom_call.1} parent=1 // pred_region
      %65 = dma.done [#allocation3], 256
    $region33: #{tpu_custom_call.1} parent=1 // pred_fallthru
      _
    // Predicated region
    $region34: #{tpu_custom_call.1} parent=1 // pred_check
      _
    $region35: #{tpu_custom_call.1} parent=1 // pred_check_branch
      %67 = sbr.rel (0) target = $region37
    $region36: #{tpu_custom_call.1} parent=1 // pred_region
      %69 = dma.done [#allocation6], 256
    $region37: #{tpu_custom_call.1} parent=1 // pred_fallthru
      _
    // Predicated region
    $region38: #{tpu_custom_call.1} parent=1 // pred_check
      _
    $region39: #{tpu_custom_call.1} parent=1 // pred_check_branch
      %71 = sbr.rel (0) target = $region41
    $region40: #{tpu_custom_call.1} parent=1 // pred_region
      %73 = dma.done [#allocation6], 1792
    $region41: #{tpu_custom_call.1} parent=1 // pred_fallthru
      _
    %v75 = vld [vmem:[#allocation7] sm:$0xf]
    %v76 = vld [vmem:[#allocation7 + $0x4] sm:$0xf]
    %v77 = vld [vmem:[#allocation7 + $0x8] sm:$0xf]
    %v78 = vld [vmem:[#allocation7 + $0xc] sm:$0xf]
    %v79 = vld [vmem:[#allocation7 + $0x10] sm:$0xf]
    %v80 = vld [vmem:[#allocation7 + $0x14] sm:$0xf]
    %v81 = vld [vmem:[#allocation7 + $0x18] sm:$0xf]
    %v82 = vld [vmem:[#allocation7 + $0x1c] sm:$0xf]
    %v83 = vld [vmem:[#allocation7 + $0x20] sm:$0xf]
    %v84 = vld [vmem:[#allocation7 + $0x24] sm:$0xf]
    %v85 = vld [vmem:[#allocation7 + $0x28] sm:$0xf]
    %v86 = vld [vmem:[#allocation7 + $0x2c] sm:$0xf]
    %v87 = vld [vmem:[#allocation7 + $0x30] sm:$0xf]
    %v88 = vld [vmem:[#allocation7 + $0x34] sm:$0xf]
    %v89 = vld [vmem:[#allocation7 + $0x38] sm:$0xf]
    %v90 = vld [vmem:[#allocation7 + $0x3c] sm:$0xf]
    %v91 = vld [vmem:[#allocation7 + $0x40] sm:$0xf]
    %v92 = vld [vmem:[#allocation7 + $0x44] sm:$0xf]
    %v93 = vld [vmem:[#allocation7 + $0x48] sm:$0xf]
    %v94 = vld [vmem:[#allocation7 + $0x4c] sm:$0xf]
    %v95 = vld [vmem:[#allocation7 + $0x50] sm:$0xf]
    %v96 = vld [vmem:[#allocation7 + $0x54] sm:$0xf]
    %v97 = vld [vmem:[#allocation7 + $0x58] sm:$0xf]
    %v98 = vld [vmem:[#allocation7 + $0x5c] sm:$0xf]
    %v99 = vld [vmem:[#allocation7 + $0x60] sm:$0xf]
    %v100 = vld [vmem:[#allocation7 + $0x64] sm:$0xf]
    %v101 = vld [vmem:[#allocation7 + $0x68] sm:$0xf]
    %v102 = vld [vmem:[#allocation7 + $0x6c] sm:$0xf]
    %v103 = vld [vmem:[%s4] sm:$0x1]
    %v104 = vld [vmem:[%s4 + $0x1] sm:$0x1]
    %v105 = vld [vmem:[%s4 + $0x2] sm:$0x1]
    %v106 = vld [vmem:[%s0] sm:$0xff]
    %v107 = vld [vmem:[%s0 + $0x8] sm:$0xff]
    %v108 = vpack.c.bf16 %v107, %v106
    %v109 = vperm.slane %v103, 0
    %v114 = vunpack.c.l.b16 %v75
    %v115 = vunpack.c.l.b16 %v76
    %v116 = vunpack.c.l.b16 %v77
    %v117 = vunpack.c.l.b16 %v78
    %v118 = vpack.c.b16 %v115, %v114
    %v119 = vpack.c.b16 %v117, %v116
    %vm122 = vcmask 261120
    %v124 = vsel %vm122, %v108, 0
    %126 = vmatpush.bf16.msra.mxu0 0
    %127 = vmatpush.bf16.msra.mxu0 0
    %128 = vmatpush.bf16.msra.mxu0 0
    %129 = vmatpush.bf16.msra.mxu0 0
    %130 = vmatpush.bf16.msra.mxu0 0
    %131 = vmatpush.bf16.msra.mxu0 0
    %132 = vmatpush.bf16.msra.mxu0 %v119
    %133 = vmatpush.bf16.msra.mxu0 %v118
    %134 = vmatmul.bf16.gmra.mxu0 %v124
    %v135 = vpop.f32.mrf.mxu0
    %v136 = vadd.f32 %v109, %v135
    %v137 = vpop.f32.mrf.mxu0
    %v138 = vadd.f32 %v109, %v137
    %139 = vdwg.mxu0
    %v140 = vld [vmem:[#allocation2] sm:$0xff]
    %v141 = vld [vmem:[#allocation2 + $0x8] sm:$0xff]
    %v142 = vpack.c.bf16 %v141, %v140
    %v143 = vld [vmem:[#allocation5] sm:$0xff]
    %v144 = vld [vmem:[#allocation5 + $0x8] sm:$0xff]
    %v145 = vpack.c.bf16 %v144, %v143
    %v150 = vunpack.c.l.b16 %v83
    %v151 = vunpack.c.l.b16 %v84
    %v152 = vunpack.c.l.b16 %v85
    %v153 = vunpack.c.l.b16 %v86
    %v154 = vpack.c.b16 %v151, %v150
    %v155 = vpack.c.b16 %v153, %v152
    %v159 = vsel %vm122, %v145, 0
    %161 = vmatpush.bf16.msra.mxu0 0
    %162 = vmatpush.bf16.msra.mxu0 0
    %163 = vmatpush.bf16.msra.mxu0 0
    %164 = vmatpush.bf16.msra.mxu0 0
    %165 = vmatpush.bf16.msra.mxu0 0
    %166 = vmatpush.bf16.msra.mxu0 0
    %167 = vmatpush.bf16.msra.mxu0 %v155
    %168 = vmatpush.bf16.msra.mxu0 %v154
    %169 = vmatmul.bf16.gmra.mxu0 %v159
    %v170 = vpop.f32.mrf.mxu0
    %v171 = vadd.f32 0.0, %v170
    %v172 = vpop.f32.mrf.mxu0
    %v173 = vadd.f32 0.0, %v172
    %174 = vdwg.mxu0
    %v179 = vunpack.c.l.b16 %v79
    %v180 = vunpack.c.l.b16 %v80
    %v181 = vunpack.c.l.b16 %v81
    %v182 = vunpack.c.l.b16 %v82
    %v183 = vpack.c.b16 %v180, %v179
    %v184 = vpack.c.b16 %v182, %v181
    %v188 = vsel %vm122, %v142, 0
    %190 = vmatpush.bf16.msra.mxu0 0
    %191 = vmatpush.bf16.msra.mxu0 0
    %192 = vmatpush.bf16.msra.mxu0 0
    %193 = vmatpush.bf16.msra.mxu0 0
    %194 = vmatpush.bf16.msra.mxu0 0
    %195 = vmatpush.bf16.msra.mxu0 0
    %196 = vmatpush.bf16.msra.mxu0 %v184
    %197 = vmatpush.bf16.msra.mxu0 %v183
    %198 = vmatmul.bf16.gmra.mxu0 %v188
    %v199 = vpop.f32.mrf.mxu0
    %v200 = vadd.f32 %v171, %v199
    %v201 = vpop.f32.mrf.mxu0
    %v202 = vadd.f32 %v173, %v201
    %203 = vdwg.mxu0
    %v204 = vperm.slane %v104, 0
    %v205 = vadd.f32 %v200, %v204
    %v206 = vadd.f32 %v202, %v204
    %v207 = vld [vmem:[%s5] sm:$0xff]
    %v208 = vld [vmem:[%s5 + $0x8] sm:$0xff]
    %v209 = vld [vmem:[%s5 + $0x10] sm:$0xff]
    %v210 = vld [vmem:[%s5 + $0x18] sm:$0xff]
    %v211 = vld [vmem:[%s5 + $0x20] sm:$0xff]
    %v212 = vld [vmem:[%s5 + $0x28] sm:$0xff]
    %v213 = vld [vmem:[%s5 + $0x30] sm:$0xff]
    %v214 = vld [vmem:[%s5 + $0x38] sm:$0xff]
    %v215 = vld [vmem:[%s6] sm:$0xff]
    %v216 = vld [vmem:[%s6 + $0x8] sm:$0xff]
    %v217 = vld [vmem:[%s6 + $0x10] sm:$0xff]
    %v218 = vld [vmem:[%s6 + $0x18] sm:$0xff]
    %v219 = vld [vmem:[%s6 + $0x20] sm:$0xff]
    %v220 = vld [vmem:[%s6 + $0x28] sm:$0xff]
    %v221 = vld [vmem:[%s6 + $0x30] sm:$0xff]
    %v222 = vld [vmem:[%s6 + $0x38] sm:$0xff]
    %v223 = vmul.f32 %v136, %v207
    %v224 = vmul.f32 %v138, %v208
    %v225 = vmul.f32 %v136, %v209
    %v226 = vmul.f32 %v138, %v210
    %v227 = vmul.f32 %v136, %v211
    %v228 = vmul.f32 %v138, %v212
    %v229 = vmul.f32 %v136, %v213
    %v230 = vmul.f32 %v138, %v214
    %v231 = vpack.c.bf16 %v224, %v223
    %v232 = vpack.c.bf16 %v226, %v225
    %v233 = vpack.c.bf16 %v228, %v227
    %v234 = vpack.c.bf16 %v230, %v229
    %v235 = vpack.c.bf16 %v206, %v205
    %236 = vmatpush.bf16.xpose.msra.mxu0 0
    %237 = vmatpush.bf16.xpose.msra.mxu0 0
    %238 = vmatpush.bf16.xpose.msra.mxu0 0
    %239 = vmatpush.bf16.xpose.msra.mxu0 0
    %240 = vmatpush.bf16.xpose.msra.mxu0 0
    %241 = vmatpush.bf16.xpose.msra.mxu0 0
    %242 = vmatpush.bf16.xpose.msra.mxu0 0
    %243 = vmatpush.bf16.xpose.msra.mxu0 %v235
    %244 = vmatmul.bf16.gmra.mxu0 %v231
    %v245 = vpop.f32.mrf.mxu0
    %v246 = vadd.f32 %v215, %v245
    %v247 = vpop.f32.mrf.mxu0
    %v248 = vadd.f32 %v216, %v247
    %249 = vmatmul.bf16.gmra.mxu0 %v232
    %v250 = vpop.f32.mrf.mxu0
    %v251 = vadd.f32 %v217, %v250
    %v252 = vpop.f32.mrf.mxu0
    %v253 = vadd.f32 %v218, %v252
    %254 = vmatmul.bf16.gmra.mxu0 %v233
    %v255 = vpop.f32.mrf.mxu0
    %v256 = vadd.f32 %v219, %v255
    %v257 = vpop.f32.mrf.mxu0
    %v258 = vadd.f32 %v220, %v257
    %259 = vmatmul.bf16.gmra.mxu0 %v234
    %v260 = vpop.f32.mrf.mxu0
    %v261 = vadd.f32 %v221, %v260
    %v262 = vpop.f32.mrf.mxu0
    %v263 = vadd.f32 %v222, %v262
    %264 = vdwg.mxu0
    %vm265 = vcmask 130048
    %v266 = vsel %vm265, %v246, -inf
    %267 = vmax.xlane.f32.xlu0 %v266
    %v268 = vpop.xlane.xlu0 %267
    %v269 = vsel %vm265, %v248, -inf
    %270 = vmax.xlane.f32.xlu0 %v269
    %v271 = vpop.xlane.xlu0 %270
    %v272 = vsel %vm265, %v251, -inf
    %273 = vmax.xlane.f32.xlu0 %v272
    %v274 = vpop.xlane.xlu0 %273
    %v275 = vsel %vm265, %v253, -inf
    %276 = vmax.xlane.f32.xlu0 %v275
    %v277 = vpop.xlane.xlu0 %276
    %v278 = vsel %vm265, %v256, -inf
    %279 = vmax.xlane.f32.xlu0 %v278
    %v280 = vpop.xlane.xlu0 %279
    %v281 = vsel %vm265, %v258, -inf
    %282 = vmax.xlane.f32.xlu0 %v281
    %v283 = vpop.xlane.xlu0 %282
    %v284 = vsel %vm265, %v261, -inf
    %285 = vmax.xlane.f32.xlu0 %v284
    %v286 = vpop.xlane.xlu0 %285
    %v287 = vsel %vm265, %v263, -inf
    %288 = vmax.xlane.f32.xlu0 %v287
    %v289 = vpop.xlane.xlu0 %288
    %v290 = vsub.f32 %v246, %v268
    %v291 = vsub.f32 %v248, %v271
    %v292 = vsub.f32 %v251, %v274
    %v293 = vsub.f32 %v253, %v277
    %v294 = vsub.f32 %v256, %v280
    %v295 = vsub.f32 %v258, %v283
    %v296 = vsub.f32 %v261, %v286
    %v297 = vsub.f32 %v263, %v289
    %v298 = vmul.f32 %v290, 1.442695
    %v299 = vpow.pop %v298
    %v300 = vmul.f32 %v291, 1.442695
    %v301 = vpow.pop %v300
    %v302 = vmul.f32 %v292, 1.442695
    %v303 = vpow.pop %v302
    %v304 = vmul.f32 %v293, 1.442695
    %v305 = vpow.pop %v304
    %v306 = vmul.f32 %v294, 1.442695
    %v307 = vpow.pop %v306
    %v308 = vmul.f32 %v295, 1.442695
    %v309 = vpow.pop %v308
    %v310 = vmul.f32 %v296, 1.442695
    %v311 = vpow.pop %v310
    %v312 = vmul.f32 %v297, 1.442695
    %v313 = vpow.pop %v312
    %v314 = vsel %vm265, %v299, 0.0
    %315 = vadd.xlane.f32.xlu0 %v314
    %v316 = vpop.xlane.xlu0 %315
    %v317 = vsel %vm265, %v301, 0.0
    %318 = vadd.xlane.f32.xlu0 %v317
    %v319 = vpop.xlane.xlu0 %318
    %v320 = vsel %vm265, %v303, 0.0
    %321 = vadd.xlane.f32.xlu0 %v320
    %v322 = vpop.xlane.xlu0 %321
    %v323 = vsel %vm265, %v305, 0.0
    %324 = vadd.xlane.f32.xlu0 %v323
    %v325 = vpop.xlane.xlu0 %324
    %v326 = vsel %vm265, %v307, 0.0
    %327 = vadd.xlane.f32.xlu0 %v326
    %v328 = vpop.xlane.xlu0 %327
    %v329 = vsel %vm265, %v309, 0.0
    %330 = vadd.xlane.f32.xlu0 %v329
    %v331 = vpop.xlane.xlu0 %330
    %v332 = vsel %vm265, %v311, 0.0
    %333 = vadd.xlane.f32.xlu0 %v332
    %v334 = vpop.xlane.xlu0 %333
    %v335 = vsel %vm265, %v313, 0.0
    %336 = vadd.xlane.f32.xlu0 %v335
    %v337 = vpop.xlane.xlu0 %336
    %v338 = vrcp.pop %v316
    %v339 = vrcp.pop %v319
    %v340 = vrcp.pop %v322
    %v341 = vrcp.pop %v325
    %v342 = vrcp.pop %v328
    %v343 = vrcp.pop %v331
    %v344 = vrcp.pop %v334
    %v345 = vrcp.pop %v337
    %v346 = vmul.f32 %v299, %v338
    %v347 = vmul.f32 %v301, %v339
    %v348 = vmul.f32 %v303, %v340
    %v349 = vmul.f32 %v305, %v341
    %v350 = vmul.f32 %v307, %v342
    %v351 = vmul.f32 %v309, %v343
    %v352 = vmul.f32 %v311, %v344
    %v353 = vmul.f32 %v313, %v345
    %vm354 = vcmp.ge.f32.partialorder %v215, 0.0
    %vm355 = vcmp.ge.f32.partialorder %v216, 0.0
    %vm356 = vcmp.ge.f32.partialorder %v217, 0.0
    %vm357 = vcmp.ge.f32.partialorder %v218, 0.0
    %vm358 = vcmp.ge.f32.partialorder %v219, 0.0
    %vm359 = vcmp.ge.f32.partialorder %v220, 0.0
    %vm360 = vcmp.ge.f32.partialorder %v221, 0.0
    %vm361 = vcmp.ge.f32.partialorder %v222, 0.0
    %v362 = vsel %vm354, 1, 0
    %v363 = vsel %vm355, 1, 0
    %v364 = vsel %vm356, 1, 0
    %v365 = vsel %vm357, 1, 0
    %v366 = vsel %vm358, 1, 0
    %v367 = vsel %vm359, 1, 0
    %v368 = vsel %vm360, 1, 0
    %v369 = vsel %vm361, 1, 0
    %v370 = vcvt.s32.f32 %v362
    %v371 = vcvt.s32.f32 %v363
    %v372 = vcvt.s32.f32 %v364
    %v373 = vcvt.s32.f32 %v365
    %v374 = vcvt.s32.f32 %v366
    %v375 = vcvt.s32.f32 %v367
    %v376 = vcvt.s32.f32 %v368
    %v377 = vcvt.s32.f32 %v369
    %v378 = vmul.f32 %v346, %v370
    %v379 = vmul.f32 %v347, %v371
    %v380 = vmul.f32 %v348, %v372
    %v381 = vmul.f32 %v349, %v373
    %v382 = vmul.f32 %v350, %v374
    %v383 = vmul.f32 %v351, %v375
    %v384 = vmul.f32 %v352, %v376
    %v385 = vmul.f32 %v353, %v377
    %v386 = vpack.c.bf16 %v379, %v378
    %v387 = vpack.c.bf16 %v381, %v380
    %v388 = vpack.c.bf16 %v383, %v382
    %v389 = vpack.c.bf16 %v385, %v384
    %v391 = vsel %vm265, %v386, 0
    %v394 = vsel %vm265, %v387, 0
    %v397 = vsel %vm265, %v388, 0
    %v400 = vsel %vm265, %v389, 0
    %402 = vmatpush.bf16.msra.mxu0 0
    %403 = vmatpush.bf16.msra.mxu0 0
    %404 = vmatpush.bf16.msra.mxu0 0
    %405 = vmatpush.bf16.msra.mxu0 0
    %406 = vmatpush.bf16.msra.mxu0 0
    %407 = vmatpush.bf16.msra.mxu0 0
    %408 = vmatpush.bf16.msra.mxu0 0
    %409 = vmatpush.bf16.msra.mxu0 %v235
    %410 = vmatmul.bf16.gmra.mxu0 %v391
    %v411 = vpop.f32.mrf.mxu0
    %v412 = vadd.f32 0.0, %v411
    %v413 = vpop.f32.mrf.mxu0
    %v414 = vadd.f32 0.0, %v413
    %415 = vmatmul.bf16.gmra.mxu0 %v394
    %v416 = vpop.f32.mrf.mxu0
    %v417 = vadd.f32 0.0, %v416
    %v418 = vpop.f32.mrf.mxu0
    %v419 = vadd.f32 0.0, %v418
    %420 = vmatmul.bf16.gmra.mxu0 %v397
    %v421 = vpop.f32.mrf.mxu0
    %v422 = vadd.f32 0.0, %v421
    %v423 = vpop.f32.mrf.mxu0
    %v424 = vadd.f32 0.0, %v423
    %425 = vmatmul.bf16.gmra.mxu0 %v400
    %v426 = vpop.f32.mrf.mxu0
    %v427 = vadd.f32 0.0, %v426
    %v428 = vpop.f32.mrf.mxu0
    %v429 = vadd.f32 0.0, %v428
    %430 = vdwg.mxu0
    %v431 = vmul.f32 %v412, %v207
    %v432 = vmul.f32 %v414, %v208
    %v433 = vmul.f32 %v417, %v209
    %v434 = vmul.f32 %v419, %v210
    %v435 = vmul.f32 %v422, %v211
    %v436 = vmul.f32 %v424, %v212
    %v437 = vmul.f32 %v427, %v213
    %v438 = vmul.f32 %v429, %v214
    %v439 = vadd.f32 %v431, %v433
    %v440 = vadd.f32 %v432, %v434
    %v441 = vadd.f32 %v439, %v435
    %v442 = vadd.f32 %v440, %v436
    %v443 = vadd.f32 %v441, %v437
    %v444 = vadd.f32 %v442, %v438
    %v445 = vpack.c.bf16 %v444, %v443
    %v446 = vperm.slane %v105, 0
    %v463 = vunpack.c.l.b16 %v87
    %v464 = vunpack.c.l.b16 %v88
    %v465 = vunpack.c.l.b16 %v89
    %v466 = vunpack.c.l.b16 %v90
    %v467 = vunpack.c.l.b16 %v91
    %v468 = vunpack.c.l.b16 %v92
    %v469 = vunpack.c.l.b16 %v93
    %v470 = vunpack.c.l.b16 %v94
    %v471 = vunpack.c.l.b16 %v95
    %v472 = vunpack.c.l.b16 %v96
    %v473 = vunpack.c.l.b16 %v97
    %v474 = vunpack.c.l.b16 %v98
    %v475 = vunpack.c.l.b16 %v99
    %v476 = vunpack.c.l.b16 %v100
    %v477 = vunpack.c.l.b16 %v101
    %v478 = vunpack.c.l.b16 %v102
    %v479 = vpack.c.b16 %v464, %v463
    %v480 = vpack.c.b16 %v466, %v465
    %v481 = vpack.c.b16 %v468, %v467
    %v482 = vpack.c.b16 %v470, %v469
    %v483 = vpack.c.b16 %v472, %v471
    %v484 = vpack.c.b16 %v474, %v473
    %v485 = vpack.c.b16 %v476, %v475
    %v486 = vpack.c.b16 %v478, %v477
    %495 = vmatpush.bf16.msra.mxu0 %v486
    %496 = vmatpush.bf16.msra.mxu0 %v485
    %497 = vmatpush.bf16.msra.mxu0 %v484
    %498 = vmatpush.bf16.msra.mxu0 %v483
    %499 = vmatpush.bf16.msra.mxu0 %v482
    %500 = vmatpush.bf16.msra.mxu0 %v481
    %501 = vmatpush.bf16.msra.mxu0 %v480
    %502 = vmatpush.bf16.msra.mxu0 %v479
    %503 = vmatmul.bf16.gmra.mxu0 %v445
    %v504 = vpop.f32.mrf.mxu0
    %v505 = vadd.f32 %v446, %v504
    %v506 = vpop.f32.mrf.mxu0
    %v507 = vadd.f32 %v446, %v506
    %508 = vdwg.mxu0
    %509 = vst [vmem:[#allocation8] sm:$0xff] %v505
    %510 = vst [vmem:[#allocation8 + $0x8] sm:$0xff] %v507
    %511 = vst [vmem:[#allocation8 + $0x10] sm:$0xff] %v205
    %512 = vst [vmem:[#allocation8 + $0x18] sm:$0xff] %v206
    // Predicated region
    $region42: #{tpu_custom_call.1} parent=1 // pred_check
      _
    $region43: #{tpu_custom_call.1} parent=1 // pred_check_branch
      %514 = sbr.rel (0) target = $region45
    $region44: #{tpu_custom_call.1} parent=1 // pred_region
      %516 = vsyncadd [#allocation4], 0
      %s517 = sshll.u32 [#allocation8], 4
      %s518 = int_to_ptr.vmem [resolvable:$true] %s517
      %s519 = sshll.u32 %s7, 4
      %s520 = int_to_ptr.hbm [resolvable:$true] %s519
      %525 = dma.vmem_to_hbm [thread:$0]  %s518, 512, %s520, [#allocation4], 128, 128, 8
    $region45: #{tpu_custom_call.1} parent=1 // pred_fallthru
      _
    // Predicated region
    $region46: #{tpu_custom_call.1} parent=1 // pred_check
      _
    $region47: #{tpu_custom_call.1} parent=1 // pred_check_branch
      %527 = sbr.rel (0) target = $region49
    $region48: #{tpu_custom_call.1} parent=1 // pred_region
      %529 = dma.done [#allocation4], 512
    $region49: #{tpu_custom_call.1} parent=1 // pred_fallthru
      _
    %530 = vsyncpa [#allocation3], 1
    %531 = vsyncpa [#allocation6], 1
    %532 = vsyncpa [#allocation4], 1

</llo_original>
